<compile_context>
chip_gen: v6e
topology: v6e:2x2x1
jax: 0.10.0
libtpu: 0.0.40
codegen_flags: <defaults>
</compile_context>

<pallas_src>
import functools

import numpy as np
import jax
import jax.numpy as jnp
from jax.experimental import pallas as pl
from jax.experimental.pallas import tpu as pltpu


# ----------------------------------------------------------------------------
# Compare-exchange building blocks (pure VPU min/max, no lax.sort).
# ----------------------------------------------------------------------------
def _ce(a, b):
    """Compare-exchange: returns (min, max)."""
    return jnp.minimum(a, b), jnp.maximum(a, b)


# Classic 19-CE median-of-9 selection network (Devillard / Paeth).
_MEDIAN9_NET = (
    (1, 2), (4, 5), (7, 8), (0, 1), (3, 4), (6, 7), (1, 2), (4, 5), (7, 8),
    (0, 3), (5, 8), (4, 7), (3, 6), (1, 4), (2, 5), (4, 7), (4, 2), (6, 4),
    (4, 2),
)


def _median9(load):
    v = [load(i) for i in range(9)]
    for a, b in _MEDIAN9_NET:
        v[a], v[b] = _ce(v[a], v[b])
    return v[4]


def _drop_min_max(v):
    """CE network removing the min and the max of the list (multiset-exact)."""
    v = list(v)
    s = len(v)
    # Pairwise CE: even slots hold pair-mins, odd slots pair-maxes.
    for i in range(0, s - 1, 2):
        v[i], v[i + 1] = _ce(v[i], v[i + 1])
    min_cands = list(range(0, s, 2))                       # (+ unpaired last if s odd)
    max_cands = list(range(1, s, 2)) + ([s - 1] if s % 2 else [])
    for i in min_cands[1:]:                                # global min -> slot 0
        v[0], v[i] = _ce(v[0], v[i])
    last = max_cands[-1]
    for i in max_cands[:-1]:                               # global max -> slot `last`
        v[i], v[last] = _ce(v[i], v[last])
    return [v[i] for i in range(1, s) if i != last]


def _median_forgetful(load, n):
    """Forgetful selection: exact lower-median of n (odd) values.

    Loads are interleaved with drops so at most n//2 + 3 values are live.
    """
    r = (n - 1) // 2
    m0 = r + 2
    work = [load(i) for i in range(m0)]
    work = _drop_min_max(work)
    for idx in range(m0, n - 1):
        work.append(load(idx))
        work = _drop_min_max(work)
    work.append(load(n - 1))
    a, b, c = work                       # 3 values left; median of 3 -> b
    a, b = _ce(a, b)
    b, c = _ce(b, c)
    a, b = _ce(a, b)
    return b


def _network_ce_count(n):
    """Compare-exchange count of the selection network (for CostEstimate)."""
    if n <= 1:
        return 0
    if n == 9:
        return len(_MEDIAN9_NET)
    r = (n - 1) // 2
    total = 3                                        # final median-of-3
    for s in range(4, r + 3):                        # drop sizes r+2 .. 4
        total += (3 * s // 2 - 2) if s % 2 == 0 else (3 * (s - 1) // 2)
    return total


# ----------------------------------------------------------------------------
# Pallas kernel: median filter over a batch of P image planes per grid step.
# ----------------------------------------------------------------------------
def _median_plane_kernel(x_ref, o_ref, xp_ref, *, k, h, w, th, tw):
    """x_ref/o_ref: (P, h, w); xp_ref: (P, h+2*pad, w+2*pad) VMEM scratch."""
    p_batch = x_ref.shape[0]
    pad = k // 2
    hp, wp = h + 2 * pad, w + 2 * pad
    dt = x_ref.dtype

    # Build the zero-padded plane in VMEM: zero the halo strips every grid
    # step (safe under megacore sharding), then copy the interior.
    if pad:
        zr = jnp.zeros((p_batch, pad, wp), dt)
        xp_ref[:, 0:pad, :] = zr
        xp_ref[:, pad + h:hp, :] = zr
        zc = jnp.zeros((p_batch, hp, pad), dt)
        xp_ref[:, :, 0:pad] = zc
        xp_ref[:, :, pad + w:wp] = zc
    xp_ref[:, pad:pad + h, pad:pad + w] = x_ref[...]

    n_th = -(-h // th)
    n_tw = -(-w // tw)

    # Rolled in-kernel loops keep the CE network's live values vreg-resident
    # (tile is <= one (8,128) vreg per sample) and bound live ranges.
    @pl.loop(0, p_batch)
    def _planes(p):
        @pl.loop(0, n_th)
        def _rows(t):
            # Clamp the last tile (overlap-recompute) so ragged H/W still work.
            r0 = jnp.minimum(t * th, h - th)

            @pl.loop(0, n_tw)
            def _cols(c):
                c0 = jnp.minimum(c * tw, w - tw)

                def load(idx):
                    di, dj = idx // k, idx % k
                    return xp_ref[p, pl.ds(r0 + di, th), pl.ds(c0 + dj, tw)]

                if k == 1:
                    med = load(0)
                elif k == 3:
                    med = _median9(load)
                else:
                    med = _median_forgetful(load, k * k)

                o_ref[p, pl.ds(r0, th), pl.ds(c0, tw)] = med


# ----------------------------------------------------------------------------
# Wrapper
# ----------------------------------------------------------------------------
def _vmem_capacity_bytes():
    try:
        return int(pltpu.get_tpu_info().vmem_capacity_bytes)
    except Exception:
        return 64 * 1024 * 1024      # conservative (v7x per-TC) fallback


def _pick_plane_batch(bc, per_plane_bytes, vmem_budget, min_steps=4):
    """Largest divisor of bc that fits the VMEM budget and keeps >= min_steps
    grid steps (so v7x's second TensorCore has work and the DMA pipeline has
    depth)."""
    cap = max(1, int(vmem_budget) // max(1, per_plane_bytes))
    steps_cap = max(1, bc // min(bc, min_steps))
    limit = min(cap, steps_cap)
    p = 1
    for d in range(1, bc + 1):
        if bc % d == 0 and d <= limit:
            p = d
    return p


def median_blur_pallas(img, kernel_size):
    """img: (N, C, H, W) -> (N, C, H, W), kornia.filters.median_blur semantics."""
    n, c, h, w = img.shape
    k = int(kernel_size)
    assert k >= 1 and k % 2 == 1, "kernel_size must be odd"
    pad = k // 2
    bc = n * c
    hp, wp = h + 2 * pad, w + 2 * pad
    isz = img.dtype.itemsize

    vmem_cap = _vmem_capacity_bytes()
    vmem_budget = vmem_cap // 2
    vmem_limit = min(int(vmem_cap * 3 // 4), 112 * 1024 * 1024)

    # Per-plane footprint: double-buffered input + output blocks + padded
    # scratch (the CE network's intermediates are vreg-resident tiles now).
    per_plane = (4 * h * w + hp * wp) * isz + (64 << 10)
    p_batch = _pick_plane_batch(bc, per_plane, vmem_budget)
    grid = (bc // p_batch,)

    th = min(h, 8)       # sublane-sized row tile
    tw = min(w, 128)     # lane-sized col tile

    x = img.reshape(bc, h, w)

    ces = _network_ce_count(k * k)
    cost = pl.CostEstimate(
        flops=2 * bc * h * w * ces,
        transcendentals=0,
        bytes_accessed=2 * bc * h * w * isz,
    )

    out = pl.pallas_call(
        functools.partial(_median_plane_kernel, k=k, h=h, w=w, th=th, tw=tw),
        out_shape=jax.ShapeDtypeStruct((bc, h, w), img.dtype),
        grid_spec=pltpu.PrefetchScalarGridSpec(
            num_scalar_prefetch=0,
            grid=grid,
            in_specs=[pl.BlockSpec((p_batch, h, w), lambda i: (i, 0, 0))],
            out_specs=pl.BlockSpec((p_batch, h, w), lambda i: (i, 0, 0)),
            scratch_shapes=[pltpu.VMEM((p_batch, hp, wp), img.dtype)],
        ),
        compiler_params=pltpu.CompilerParams(
            dimension_semantics=("parallel",),
            vmem_limit_bytes=vmem_limit,
        ),
        cost_estimate=cost,
    )(x)

    return out.reshape(n, c, h, w)


# ----------------------------------------------------------------------------
# Module wrapper mirroring the PyTorch MedianFilter
# ----------------------------------------------------------------------------
class MedianFilterPallas:
    """JAX/Pallas equivalent of the PyTorch MedianFilter module."""

    def __init__(self, kernel_size=None):
        if kernel_size is None:
            kernel_sizes = [3, 5, 7, 9]
            random_idx = np.random.randint(0, 4, 1)[0]   # host-side, as in PyTorch
            self.kernel_size = kernel_sizes[random_idx]
        else:
            self.kernel_size = kernel_size

    def __call__(self, img):
        return median_blur_pallas(img, self.kernel_size)


if __name__ == "__main__":
    key = jax.random.PRNGKey(0)
    img = jax.random.normal(key, (2, 4, 16, 16), dtype=jnp.float32)

    for ksz in (3, 5):
        mod = MedianFilterPallas(kernel_size=ksz)
        out = jax.block_until_ready(mod(img))
        assert out.shape == img.shape

        # pure-JAX reference: zero pad, stack k*k windows, take lower median
        p = ksz // 2
        xp = jnp.pad(img, ((0, 0), (0, 0), (p, p), (p, p)))
        h, w = img.shape[-2:]
        wins = jnp.stack([xp[..., di:di + h, dj:dj + w]
                          for di in range(ksz) for dj in range(ksz)], axis=0)
        ref = jnp.sort(wins, axis=0)[(ksz * ksz - 1) // 2]
        np.testing.assert_allclose(np.asarray(out), np.asarray(ref),
                                   rtol=0, atol=1e-6)

    print("KERNEL_OK")
</pallas_src>

<mosaic_0001>
module attributes {stable_mosaic.version = 11 : i64} {
  func.func @_median_plane_kernel(%arg0: i32, %arg1: memref<2x16x16xf32, #tpu.memory_space<vmem>>, %arg2: memref<2x16x16xf32, #tpu.memory_space<vmem>>, %arg3: memref<2x18x18xf32, #tpu.memory_space<vmem>>) attributes {dimension_semantics = [#tpu.dimension_semantics<parallel>], iteration_bounds = array<i64: 4>, scalar_prefetch = 0 : i64, scratch_operands = 1 : i64, tpu.core_type = #tpu.core_type<tc>, window_params = [{transform_indices = @transform_0, window_bounds = array<i64: 2, 16, 16>}, {transform_indices = @transform_1, window_bounds = array<i64: 2, 16, 16>}]} {
    %cst = arith.constant 0.000000e+00 : f32
    %0 = vector.broadcast %cst : f32 to vector<2x1x18xf32>
    %c0 = arith.constant 0 : index
    %c0_0 = arith.constant 0 : index
    %c0_1 = arith.constant 0 : index
    %1 = vector.load %arg3[%c0, %c0_0, %c0_1] : memref<2x18x18xf32, #tpu.memory_space<vmem>>, vector<2x1x18xf32>
    tpu.vector_store %arg3[%c0, %c0_0, %c0_1], %0 {strides = array<i32>} : memref<2x18x18xf32, #tpu.memory_space<vmem>>, vector<2x1x18xf32>,
    %c0_2 = arith.constant 0 : index
    %c17 = arith.constant 17 : index
    %c0_3 = arith.constant 0 : index
    %2 = vector.load %arg3[%c0_2, %c17, %c0_3] : memref<2x18x18xf32, #tpu.memory_space<vmem>>, vector<2x1x18xf32>
    tpu.vector_store %arg3[%c0_2, %c17, %c0_3], %0 {strides = array<i32>} : memref<2x18x18xf32, #tpu.memory_space<vmem>>, vector<2x1x18xf32>,
    %cst_4 = arith.constant 0.000000e+00 : f32
    %3 = vector.broadcast %cst_4 : f32 to vector<2x18x1xf32>
    %c0_5 = arith.constant 0 : index
    %c0_6 = arith.constant 0 : index
    %c0_7 = arith.constant 0 : index
    %4 = vector.load %arg3[%c0_5, %c0_6, %c0_7] : memref<2x18x18xf32, #tpu.memory_space<vmem>>, vector<2x18x1xf32>
    tpu.vector_store %arg3[%c0_5, %c0_6, %c0_7], %3 {strides = array<i32>} : memref<2x18x18xf32, #tpu.memory_space<vmem>>, vector<2x18x1xf32>,
    %c0_8 = arith.constant 0 : index
    %c0_9 = arith.constant 0 : index
    %c17_10 = arith.constant 17 : index
    %5 = vector.load %arg3[%c0_8, %c0_9, %c17_10] : memref<2x18x18xf32, #tpu.memory_space<vmem>>, vector<2x18x1xf32>
    tpu.vector_store %arg3[%c0_8, %c0_9, %c17_10], %3 {strides = array<i32>} : memref<2x18x18xf32, #tpu.memory_space<vmem>>, vector<2x18x1xf32>,
    %c0_11 = arith.constant 0 : index
    %c0_12 = arith.constant 0 : index
    %c0_13 = arith.constant 0 : index
    %6 = vector.load %arg1[%c0_11, %c0_12, %c0_13] : memref<2x16x16xf32, #tpu.memory_space<vmem>>, vector<2x16x16xf32>
    %c0_14 = arith.constant 0 : index
    %c1 = arith.constant 1 : index
    %c1_15 = arith.constant 1 : index
    %7 = vector.load %arg3[%c0_14, %c1, %c1_15] : memref<2x18x18xf32, #tpu.memory_space<vmem>>, vector<2x16x16xf32>
    tpu.vector_store %arg3[%c0_14, %c1, %c1_15], %6 {strides = array<i32>} : memref<2x18x18xf32, #tpu.memory_space<vmem>>, vector<2x16x16xf32>,
    %c0_i32 = arith.constant 0 : i32
    %c2_i32 = arith.constant 2 : i32
    %8 = arith.addi %c0_i32, %c2_i32 : i32
    %c1_i32 = arith.constant 1 : i32
    scf.for %arg4 = %c0_i32 to %8 step %c1_i32  : i32 {
      %c1_i32_17 = arith.constant 1 : i32
      %9 = arith.muli %arg4, %c1_i32_17 : i32
      %c0_i32_18 = arith.constant 0 : i32
      %10 = arith.addi %c0_i32_18, %9 : i32
      %c0_i32_19 = arith.constant 0 : i32
      %c2_i32_20 = arith.constant 2 : i32
      %11 = arith.addi %c0_i32_19, %c2_i32_20 : i32
      %c1_i32_21 = arith.constant 1 : i32
      scf.for %arg5 = %c0_i32_19 to %11 step %c1_i32_21  : i32 {
        %c1_i32_23 = arith.constant 1 : i32
        %12 = arith.muli %arg5, %c1_i32_23 : i32
        %c0_i32_24 = arith.constant 0 : i32
        %13 = arith.addi %c0_i32_24, %12 : i32
        %c8_i32 = arith.constant 8 : i32
        %14 = arith.muli %13, %c8_i32 : i32
        %c8_i32_25 = arith.constant 8 : i32
        %15 = arith.minsi %14, %c8_i32_25 : i32
        %c0_i32_26 = arith.constant 0 : i32
        %c1_i32_27 = arith.constant 1 : i32
        %16 = arith.muli %c0_i32_26, %c1_i32_27 : i32
        %c0_i32_28 = arith.constant 0 : i32
        %17 = arith.addi %c0_i32_28, %16 : i32
        %c16_i32 = arith.constant 16 : i32
        %18 = arith.muli %17, %c16_i32 : i32
        %c0_i32_29 = arith.constant 0 : i32
        %19 = arith.minsi %18, %c0_i32_29 : i32
        %c0_i32_30 = arith.constant 0 : i32
        %20 = arith.addi %15, %c0_i32_30 : i32
        %c0_i32_31 = arith.constant 0 : i32
        %21 = arith.addi %19, %c0_i32_31 : i32
        %22 = arith.index_cast %10 : i32 to index
        %23 = arith.index_cast %20 : i32 to index
        %24 = arith.index_cast %21 : i32 to index
        %25 = vector.load %arg3[%22, %23, %24] : memref<2x18x18xf32, #tpu.memory_space<vmem>>, vector<1x8x16xf32>
        %26 = vector.shape_cast %25 : vector<1x8x16xf32> to vector<8x16xf32>
        %c0_i32_32 = arith.constant 0 : i32
        %27 = arith.addi %15, %c0_i32_32 : i32
        %c1_i32_33 = arith.constant 1 : i32
        %28 = arith.addi %19, %c1_i32_33 : i32
        %29 = arith.index_cast %10 : i32 to index
        %30 = arith.index_cast %27 : i32 to index
        %31 = arith.index_cast %28 : i32 to index
        %32 = vector.load %arg3[%29, %30, %31] : memref<2x18x18xf32, #tpu.memory_space<vmem>>, vector<1x8x16xf32>
        %33 = vector.shape_cast %32 : vector<1x8x16xf32> to vector<8x16xf32>
        %c0_i32_34 = arith.constant 0 : i32
        %34 = arith.addi %15, %c0_i32_34 : i32
        %c2_i32_35 = arith.constant 2 : i32
        %35 = arith.addi %19, %c2_i32_35 : i32
        %36 = arith.index_cast %10 : i32 to index
        %37 = arith.index_cast %34 : i32 to index
        %38 = arith.index_cast %35 : i32 to index
        %39 = vector.load %arg3[%36, %37, %38] : memref<2x18x18xf32, #tpu.memory_space<vmem>>, vector<1x8x16xf32>
        %40 = vector.shape_cast %39 : vector<1x8x16xf32> to vector<8x16xf32>
        %c1_i32_36 = arith.constant 1 : i32
        %41 = arith.addi %15, %c1_i32_36 : i32
        %c0_i32_37 = arith.constant 0 : i32
        %42 = arith.addi %19, %c0_i32_37 : i32
        %43 = arith.index_cast %10 : i32 to index
        %44 = arith.index_cast %41 : i32 to index
        %45 = arith.index_cast %42 : i32 to index
        %46 = vector.load %arg3[%43, %44, %45] : memref<2x18x18xf32, #tpu.memory_space<vmem>>, vector<1x8x16xf32>
        %47 = vector.shape_cast %46 : vector<1x8x16xf32> to vector<8x16xf32>
        %c1_i32_38 = arith.constant 1 : i32
        %48 = arith.addi %15, %c1_i32_38 : i32
        %c1_i32_39 = arith.constant 1 : i32
        %49 = arith.addi %19, %c1_i32_39 : i32
        %50 = arith.index_cast %10 : i32 to index
        %51 = arith.index_cast %48 : i32 to index
        %52 = arith.index_cast %49 : i32 to index
        %53 = vector.load %arg3[%50, %51, %52] : memref<2x18x18xf32, #tpu.memory_space<vmem>>, vector<1x8x16xf32>
        %54 = vector.shape_cast %53 : vector<1x8x16xf32> to vector<8x16xf32>
        %c1_i32_40 = arith.constant 1 : i32
        %55 = arith.addi %15, %c1_i32_40 : i32
        %c2_i32_41 = arith.constant 2 : i32
        %56 = arith.addi %19, %c2_i32_41 : i32
        %57 = arith.index_cast %10 : i32 to index
        %58 = arith.index_cast %55 : i32 to index
        %59 = arith.index_cast %56 : i32 to index
        %60 = vector.load %arg3[%57, %58, %59] : memref<2x18x18xf32, #tpu.memory_space<vmem>>, vector<1x8x16xf32>
        %61 = vector.shape_cast %60 : vector<1x8x16xf32> to vector<8x16xf32>
        %c2_i32_42 = arith.constant 2 : i32
        %62 = arith.addi %15, %c2_i32_42 : i32
        %c0_i32_43 = arith.constant 0 : i32
        %63 = arith.addi %19, %c0_i32_43 : i32
        %64 = arith.index_cast %10 : i32 to index
        %65 = arith.index_cast %62 : i32 to index
        %66 = arith.index_cast %63 : i32 to index
        %67 = vector.load %arg3[%64, %65, %66] : memref<2x18x18xf32, #tpu.memory_space<vmem>>, vector<1x8x16xf32>
        %68 = vector.shape_cast %67 : vector<1x8x16xf32> to vector<8x16xf32>
        %c2_i32_44 = arith.constant 2 : i32
        %69 = arith.addi %15, %c2_i32_44 : i32
        %c1_i32_45 = arith.constant 1 : i32
        %70 = arith.addi %19, %c1_i32_45 : i32
        %71 = arith.index_cast %10 : i32 to index
        %72 = arith.index_cast %69 : i32 to index
        %73 = arith.index_cast %70 : i32 to index
        %74 = vector.load %arg3[%71, %72, %73] : memref<2x18x18xf32, #tpu.memory_space<vmem>>, vector<1x8x16xf32>
        %75 = vector.shape_cast %74 : vector<1x8x16xf32> to vector<8x16xf32>
        %c2_i32_46 = arith.constant 2 : i32
        %76 = arith.addi %15, %c2_i32_46 : i32
        %c2_i32_47 = arith.constant 2 : i32
        %77 = arith.addi %19, %c2_i32_47 : i32
        %78 = arith.index_cast %10 : i32 to index
        %79 = arith.index_cast %76 : i32 to index
        %80 = arith.index_cast %77 : i32 to index
        %81 = vector.load %arg3[%78, %79, %80] : memref<2x18x18xf32, #tpu.memory_space<vmem>>, vector<1x8x16xf32>
        %82 = vector.shape_cast %81 : vector<1x8x16xf32> to vector<8x16xf32>
        %83 = arith.minimumf %33, %40 : vector<8x16xf32>
        %84 = arith.maximumf %33, %40 : vector<8x16xf32>
        %85 = arith.minimumf %54, %61 : vector<8x16xf32>
        %86 = arith.maximumf %54, %61 : vector<8x16xf32>
        %87 = arith.minimumf %75, %82 : vector<8x16xf32>
        %88 = arith.maximumf %75, %82 : vector<8x16xf32>
        %89 = arith.minimumf %26, %83 : vector<8x16xf32>
        %90 = arith.maximumf %26, %83 : vector<8x16xf32>
        %91 = arith.minimumf %47, %85 : vector<8x16xf32>
        %92 = arith.maximumf %47, %85 : vector<8x16xf32>
        %93 = arith.minimumf %68, %87 : vector<8x16xf32>
        %94 = arith.maximumf %68, %87 : vector<8x16xf32>
        %95 = arith.minimumf %90, %84 : vector<8x16xf32>
        %96 = arith.maximumf %90, %84 : vector<8x16xf32>
        %97 = arith.minimumf %92, %86 : vector<8x16xf32>
        %98 = arith.maximumf %92, %86 : vector<8x16xf32>
        %99 = arith.minimumf %94, %88 : vector<8x16xf32>
        %100 = arith.maximumf %94, %88 : vector<8x16xf32>
        %101 = arith.maximumf %89, %91 : vector<8x16xf32>
        %102 = arith.minimumf %98, %100 : vector<8x16xf32>
        %103 = arith.minimumf %97, %99 : vector<8x16xf32>
        %104 = arith.maximumf %97, %99 : vector<8x16xf32>
        %105 = arith.maximumf %101, %93 : vector<8x16xf32>
        %106 = arith.maximumf %95, %103 : vector<8x16xf32>
        %107 = arith.minimumf %96, %102 : vector<8x16xf32>
        %108 = arith.minimumf %106, %104 : vector<8x16xf32>
        %109 = arith.minimumf %108, %107 : vector<8x16xf32>
        %110 = arith.maximumf %108, %107 : vector<8x16xf32>
        %111 = arith.maximumf %105, %109 : vector<8x16xf32>
        %112 = arith.minimumf %111, %110 : vector<8x16xf32>
        %113 = arith.index_cast %10 : i32 to index
        %114 = arith.index_cast %15 : i32 to index
        %115 = arith.index_cast %19 : i32 to index
        %116 = vector.load %arg2[%113, %114, %115] : memref<2x16x16xf32, #tpu.memory_space<vmem>>, vector<1x8x16xf32>
        %117 = vector.shape_cast %116 : vector<1x8x16xf32> to vector<8x16xf32>
        %118 = vector.shape_cast %112 : vector<8x16xf32> to vector<1x8x16xf32>
        tpu.vector_store %arg2[%113, %114, %115], %118 {strides = array<i32>} : memref<2x16x16xf32, #tpu.memory_space<vmem>>, vector<1x8x16xf32>,
        %c1_i32_48 = arith.constant 1 : i32
      }
      %c2_i32_22 = arith.constant 2 : i32
    }
    %c2_i32_16 = arith.constant 2 : i32
    return
  }
  func.func @transform_0(%arg0: i32) -> (i32, i32, i32) {
    %c0_i32 = arith.constant 0 : i32
    %c0_i32_0 = arith.constant 0 : i32
    %c0_i32_1 = arith.constant 0 : i32
    return %arg0, %c0_i32, %c0_i32_0 : i32, i32, i32
  }
  func.func @transform_1(%arg0: i32) -> (i32, i32, i32) {
    %c0_i32 = arith.constant 0 : i32
    %c0_i32_0 = arith.constant 0 : i32
    %c0_i32_1 = arith.constant 0 : i32
    return %arg0, %c0_i32, %c0_i32_0 : i32, i32, i32
  }
}

</mosaic_0001>

<llo_original>
// kernel: tpu_custom_call.1
$region0: #{tpu_custom_call.1}
  #allocation0 [shape = 'u32[]', space=smem, size = 0x4, offset = 0x4, fixed_abs, tag = 'smem constant byte address 0x4 - core index']
  #allocation1 [shape = 'u32[144,128]{1,0:T(1,128)}', space=vmem, size = 0x12000, scoped, tag = 'internal scratch']
  #allocation2 [shape = 'f32[2,18,18]{2,1,0:T(8,128)}', space=vmem, size = 0x6000, scoped, tag = 'scratch operand']
  %s0 = inlined_call_operand.hbm [shape: f32[8,16,16], index: 0, kind: input, shape index: {}]
  %s1 = inlined_call_operand.hbm [shape: f32[8,16,16], index: 1, kind: output, shape index: {}]
  %s2 = sld [smem:[#allocation0]]
  $region55: #{tpu_custom_call.1} parent=0
    _
  %s4 = ssub.s32 1, %s2
  %s5 = scalar_select 0, %s4, %s2
  $region1: #{tpu_custom_call.1} parent=0
    #allocation3 [shape = 'u8[32768]{0}', space=vmem, size = 0x8000, scoped, tag = 'input window, operand 0']
    #allocation4 [shape = 's32[2]{0}', space=sflag, size = 0x8, scoped, tag = 'scoped memory for tpu_custom_call.1']
    #allocation5 [shape = 's32[2]{0}', space=sflag, size = 0x8, scoped, tag = 'scoped memory for tpu_custom_call.1']
    #allocation6 [shape = 'u8[32768]{0}', space=vmem, size = 0x8000, scoped, tag = 'output window, operand 0']
    %6 = vsyncpa [#allocation4], 0
    %s7 = scalar_lea.sflag [#allocation4], 1
    %8 = vsyncpa %s7, 0
    %9 = vsyncpa [#allocation5], 0
    %s10 = scalar_lea.sflag [#allocation5], 1
    %11 = vsyncpa %s10, 0
    loop: start=0, step=1, limit=6
    $region2: #{tpu_custom_call.1} parent=1 // loop_pre_header
      _
    $region3: #{tpu_custom_call.1} parent=1 // loop_header
      %s13 = sphi 0, %s17
      %p14 = scmp.ge.s32.totalorder %s13, 6
      %s23 = sphi 0, %s25
      %s26 = sphi 0, %s23
      %s27 = sphi 0, %s26
      %s43 = sphi 0, %s27
      %s49 = sphi 0, %s51
      %s52 = sphi 0, %s49
      %s53 = sphi 0, %s52
      %s69 = sphi 0, %s53
    $region4: #{tpu_custom_call.1} parent=1 // loop_header_branch
      %16 = sbr.rel (%p14) target = $region8
    $region5: #{tpu_custom_call.1} parent=1 // loop_body
      %s18 = ssub.s32 %s13, 1
      %s19 = ssub.s32 %s13, 2
      %s20 = sadd.s32 %s13, 1
      %s21 = ssub.s32 %s13, %s20
      %p22 = scmp.eq.s32.totalorder %s21, 0
      %s24 = sadd.s32 %s23, 1
      %s25 = scalar_select %p22, %s23, %s24
      %p28 = pneg %p22
      %p29 = scmp.eq.s32.totalorder %s13, 3
      %p30 = por %p28, %p29
      %p31 = scmp.ne.s32.totalorder %s23, %s26
      %p32 = scmp.eq.s32.totalorder %s13, 0
      %p33 = por %p31, %p32
      %p34 = scmp.ne.s32.totalorder %s23, %s26
      %p35 = scmp.eq.s32.totalorder %s18, 3
      %p36 = por %p34, %p35
      %p37 = scmp.ne.s32.totalorder %s26, %s27
      %p38 = scmp.eq.s32.totalorder %s18, 0
      %p39 = por %p37, %p38
      %p40 = scmp.ne.s32.totalorder %s26, %s27
      %p41 = scmp.eq.s32.totalorder %s19, 3
      %p42 = por %p40, %p41
      %p44 = scmp.ne.s32.totalorder %s27, %s43
      %p45 = scmp.eq.s32.totalorder %s19, 0
      %p46 = por %p44, %p45
      %s47 = ssub.s32 %s13, %s20
      %p48 = scmp.eq.s32.totalorder %s47, 0
      %s50 = sadd.s32 %s49, 1
      %s51 = scalar_select %p48, %s49, %s50
      %p54 = pneg %p48
      %p55 = scmp.eq.s32.totalorder %s13, 3
      %p56 = por %p54, %p55
      %p57 = scmp.ne.s32.totalorder %s49, %s52
      %p58 = scmp.eq.s32.totalorder %s13, 0
      %p59 = por %p57, %p58
      %p60 = scmp.ne.s32.totalorder %s49, %s52
      %p61 = scmp.eq.s32.totalorder %s18, 3
      %p62 = por %p60, %p61
      %p63 = scmp.ne.s32.totalorder %s52, %s53
      %p64 = scmp.eq.s32.totalorder %s18, 0
      %p65 = por %p63, %p64
      %p66 = scmp.ne.s32.totalorder %s52, %s53
      %p67 = scmp.eq.s32.totalorder %s19, 3
      %p68 = por %p66, %p67
      %p70 = scmp.ne.s32.totalorder %s53, %s69
      %p71 = scmp.eq.s32.totalorder %s19, 0
      %p72 = por %p70, %p71
      %p73 = scmp.le.s32.totalorder 1, %s13
      %p74 = scmp.lt.s32.totalorder %s13, 5
      %p75 = pnand %p73, %p74
      %p76 = pneg %p75
      // Predicated region
      $region9: #{tpu_custom_call.1} parent=5 // pred_check
        _
      $region10: #{tpu_custom_call.1} parent=5 // pred_check_branch
        %78 = sbr.rel (%p75) target = $region12
      $region11: #{tpu_custom_call.1} parent=5 // pred_region
        %s79 = ssub.s32 %s13, 1
      $region12: #{tpu_custom_call.1} parent=5 // pred_fallthru
        _
      %p80 = scmp.lt.s32.totalorder %s13, 4
      // Predicated region
      $region13: #{tpu_custom_call.1} parent=5 // pred_check
        %p81 = pneg %p80
      $region14: #{tpu_custom_call.1} parent=5 // pred_check_branch
        %83 = sbr.rel (%p81) target = $region16
      $region15: #{tpu_custom_call.1} parent=5 // pred_region
        // Predicated region
        $region17: #{tpu_custom_call.1} parent=15 // pred_check
          %p84 = pneg %p33
        $region18: #{tpu_custom_call.1} parent=15 // pred_check_branch
          %86 = sbr.rel (%p84) target = $region20
        $region19: #{tpu_custom_call.1} parent=15 // pred_region
          %s87 = sand.u32 %s23, 1
          %s88 = scalar_lea.sflag [#allocation4], %s87
          %s89 = sand.u32 %s23, 1
          %s90 = smul.addr %s89, 32
          %s91 = scalar_lea.vmem [#allocation3], %s90
          %s92 = smul.u32 2, %s13
          %s94 = ssub.s32 512, 512
          %95 = vsyncadd %s88, %s94
          %s96 = smul.addr %s92, 2
          %s97 = smul.addr %s96, 128
          %s98 = scalar_lea.hbm %s0, %s97
          %s99 = sshll.u32 %s91, 4
          %s100 = int_to_ptr.vmem [resolvable:$true] %s99
          %105 = dma.hbm_to_vmem [thread:$0]  %s98, 512, %s100, %s88, 128, 128, 8
        $region20: #{tpu_custom_call.1} parent=15 // pred_fallthru
          _
      $region16: #{tpu_custom_call.1} parent=5 // pred_fallthru
        _
      %p106 = scmp.le.s32.totalorder 1, %s13
      %p107 = scmp.lt.s32.totalorder %s13, 5
      %p108 = pnand %p106, %p107
      %p109 = pneg %p108
      // Predicated region
      $region21: #{tpu_custom_call.1} parent=5 // pred_check
        _
      $region22: #{tpu_custom_call.1} parent=5 // pred_check_branch
        %111 = sbr.rel (%p108) target = $region24
      $region23: #{tpu_custom_call.1} parent=5 // pred_region
        %s112 = ssub.s32 %s13, 1
        %s113 = sand.u32 %s26, 1
        %s114 = scalar_lea.sflag [#allocation4], %s113
        %s115 = sand.u32 %s26, 1
        %s116 = smul.addr %s115, 32
        %s117 = scalar_lea.vmem [#allocation3], %s116
        // Predicated region
        $region25: #{tpu_custom_call.1} parent=23 // pred_check
          %p118 = pneg %p39
        $region26: #{tpu_custom_call.1} parent=23 // pred_check_branch
          %120 = sbr.rel (%p118) target = $region28
        $region27: #{tpu_custom_call.1} parent=23 // pred_region
          %121 = dma.done %s114, 512
        $region28: #{tpu_custom_call.1} parent=23 // pred_fallthru
          _
        %s122 = sand.u32 %s26, 1
        %s123 = scalar_lea.sflag [#allocation4], %s122
        %s124 = sand.u32 %s26, 1
        %s125 = smul.addr %s124, 32
        %s126 = scalar_lea.vmem [#allocation3], %s125
        %p127 = pneg %p39
        %p128 = pneg %p36
        %p129 = pneg %p65
        %p130 = pneg %p62
        %s131 = sand.u32 %s52, 1
        %s132 = scalar_lea.sflag [#allocation5], %s131
        %s133 = sand.u32 %s52, 1
        %s134 = smul.addr %s133, 32
        %s135 = scalar_lea.vmem [#allocation6], %s134
        %s136 = smul.u32 2, %s18
        %s137 = smul.u32 2, %s18
        %vm138 = vcmask 139264
        %139 = vst.msk [vmem:[#allocation2] sm:$0x1] %vm138, 0.0
        %140 = vst.msk [vmem:[#allocation2 + $0x18] sm:$0x1] %vm138, 0.0
        %141 = vst.msk [vmem:[#allocation2 + $0x11] sm:$0x1] %vm138, 0.0
        %142 = vst.msk [vmem:[#allocation2 + $0x29] sm:$0x1] %vm138, 0.0
        %vm143 = vcmask 7168
        %144 = vst.msk [vmem:[#allocation2] sm:$0xff] %vm143, 0.0
        %145 = vst.msk [vmem:[#allocation2 + $0x8] sm:$0xff] %vm143, 0.0
        %vm146 = vcmask 1024
        %147 = vst.msk [vmem:[#allocation2 + $0x10] sm:$0x3] %vm146, 0.0
        %148 = vst.msk [vmem:[#allocation2 + $0x18] sm:$0xff] %vm143, 0.0
        %149 = vst.msk [vmem:[#allocation2 + $0x20] sm:$0xff] %vm143, 0.0
        %150 = vst.msk [vmem:[#allocation2 + $0x28] sm:$0x3] %vm146, 0.0
        %vm151 = vcmask 146568
        %152 = vst.msk [vmem:[#allocation2] sm:$0xff] %vm151, 0.0
        %153 = vst.msk [vmem:[#allocation2 + $0x8] sm:$0xff] %vm151, 0.0
        %vm154 = vcmask 140424
        %155 = vst.msk [vmem:[#allocation2 + $0x10] sm:$0x3] %vm154, 0.0
        %156 = vst.msk [vmem:[#allocation2 + $0x18] sm:$0xff] %vm151, 0.0
        %157 = vst.msk [vmem:[#allocation2 + $0x20] sm:$0xff] %vm151, 0.0
        %158 = vst.msk [vmem:[#allocation2 + $0x28] sm:$0x3] %vm154, 0.0
        %v159 = vld [vmem:[%s117] sm:$0xff]
        %v160 = vld [vmem:[%s117 + $0x8] sm:$0xff]
        %v161 = vld [vmem:[%s117 + $0x10] sm:$0xff]
        %v162 = vld [vmem:[%s117 + $0x18] sm:$0xff]
        %167 = vrot.lane.b32.xlu0 %v159, 1
        %v168 = vpop.permute.xlu0 %167
        %169 = vrot.lane.b32.xlu0 %v160, 1
        %v170 = vpop.permute.xlu0 %169
        %171 = vrot.lane.b32.xlu0 %v161, 1
        %v172 = vpop.permute.xlu0 %171
        %173 = vrot.lane.b32.xlu0 %v162, 1
        %v174 = vpop.permute.xlu0 %173
        %vm179 = vcmask 138248
        %180 = vst.msk [vmem:[#allocation2 + $0x1] sm:$0xff] %vm179, %v168
        %181 = vst.msk [vmem:[#allocation2 + $0x9] sm:$0xff] %vm179, %v170
        %182 = vst.msk [vmem:[#allocation2 + $0x19] sm:$0xff] %vm179, %v172
        %183 = vst.msk [vmem:[#allocation2 + $0x21] sm:$0xff] %vm179, %v174
        loop: start=0, step=1, limit=2
        $region29: #{tpu_custom_call.1} parent=23 // loop_pre_header
          _
        $region30: #{tpu_custom_call.1} parent=23 // loop_header
          %s185 = sphi 0, %s189
          %p186 = scmp.ge.s32.totalorder %s185, 2
        $region31: #{tpu_custom_call.1} parent=23 // loop_header_branch
          %188 = sbr.rel (%p186) target = $region35
        $region32: #{tpu_custom_call.1} parent=23 // loop_body
          loop: start=0, step=1, limit=2
          $region36: #{tpu_custom_call.1} parent=32 // loop_pre_header
            _
          $region37: #{tpu_custom_call.1} parent=32 // loop_header
            %s191 = sphi 0, %s195
            %p192 = scmp.ge.s32.totalorder %s191, 2
          $region38: #{tpu_custom_call.1} parent=32 // loop_header_branch
            %194 = sbr.rel (%p192) target = $region42
          $region39: #{tpu_custom_call.1} parent=32 // loop_body
            %s196 = smul.u32 %s191, 8
            %p197 = scmp.lt.s32.totalorder %s196, 8
            %s198 = scalar_select %p197, %s196, 8
            %s199 = smul.u32 %s185, 24
            %s200 = sadd.s32 %s198, %s199
            %s201 = scalar_lea.vmem [#allocation2], %s200
            %v202 = vld [vmem:[%s201] sm:$0xff]
            %s203 = sadd.s32 %s198, 1
            %s204 = sadd.s32 %s203, %s199
            %s205 = scalar_lea.vmem [#allocation2], %s204
            %v206 = vld [vmem:[%s205] sm:$0xff]
            %s207 = sadd.s32 %s198, 2
            %s208 = sadd.s32 %s207, %s199
            %s209 = scalar_lea.vmem [#allocation2], %s208
            %v210 = vld [vmem:[%s209] sm:$0xff]
            %212 = vrot.lane.b32.xlu0 %v202, 127
            %v213 = vpop.permute.xlu0 %212
            %v215 = vmin.f32 %v202, %v213
            %v216 = vmax.f32 %v202, %v213
            %218 = vrot.lane.b32.xlu0 %v206, 127
            %v219 = vpop.permute.xlu0 %218
            %v221 = vmin.f32 %v206, %v219
            %v222 = vmax.f32 %v206, %v219
            %224 = vrot.lane.b32.xlu0 %v210, 127
            %v225 = vpop.permute.xlu0 %224
            %v227 = vmin.f32 %v210, %v225
            %v228 = vmax.f32 %v210, %v225
            %230 = vrot.lane.b32.xlu0 %v215, 127
            %v231 = vpop.permute.xlu0 %230
            %v233 = vmin.f32 %v202, %v231
            %v234 = vmax.f32 %v202, %v231
            %236 = vrot.lane.b32.xlu0 %v221, 127
            %v237 = vpop.permute.xlu0 %236
            %v239 = vmin.f32 %v206, %v237
            %v240 = vmax.f32 %v206, %v237
            %242 = vrot.lane.b32.xlu0 %v227, 127
            %v243 = vpop.permute.xlu0 %242
            %v245 = vmin.f32 %v210, %v243
            %v246 = vmax.f32 %v210, %v243
            %248 = vrot.lane.b32.xlu0 %v216, 127
            %v249 = vpop.permute.xlu0 %248
            %v251 = vmin.f32 %v234, %v249
            %v252 = vmax.f32 %v234, %v249
            %254 = vrot.lane.b32.xlu0 %v222, 127
            %v255 = vpop.permute.xlu0 %254
            %v257 = vmin.f32 %v240, %v255
            %v258 = vmax.f32 %v240, %v255
            %260 = vrot.lane.b32.xlu0 %v228, 127
            %v261 = vpop.permute.xlu0 %260
            %v263 = vmin.f32 %v246, %v261
            %v264 = vmax.f32 %v246, %v261
            %v265 = vmax.f32 %v233, %v239
            %v266 = vmin.f32 %v258, %v264
            %v267 = vmin.f32 %v257, %v263
            %v268 = vmax.f32 %v257, %v263
            %v269 = vmax.f32 %v265, %v245
            %v270 = vmax.f32 %v251, %v267
            %v271 = vmin.f32 %v252, %v266
            %v272 = vmin.f32 %v270, %v268
            %v273 = vmin.f32 %v272, %v271
            %v274 = vmax.f32 %v272, %v271
            %v275 = vmax.f32 %v269, %v273
            %v276 = vmin.f32 %v275, %v274
            %s277 = smul.u32 %s185, 16
            %s278 = sadd.s32 %s198, %s277
            %s279 = scalar_lea.vmem %s135, %s278 [#allocation6]
            %vm280 = vcmask 130048
            %281 = vst.msk [vmem:[%s279] sm:$0xff] %vm280, %v276
          $region40: #{tpu_custom_call.1} parent=32 // loop_footer
            %s195 = sadd.s32 1, %s191
          $region41: #{tpu_custom_call.1} parent=32 // loop_footer_branch
            %190 = sbr.rel target = $region37
          $region42: #{tpu_custom_call.1} parent=32 // loop_exit
            _
        $region33: #{tpu_custom_call.1} parent=23 // loop_footer
          %s189 = sadd.s32 1, %s185
        $region34: #{tpu_custom_call.1} parent=23 // loop_footer_branch
          %184 = sbr.rel target = $region30
        $region35: #{tpu_custom_call.1} parent=23 // loop_exit
          _
        %s282 = sand.u32 %s52, 1
        %s283 = scalar_lea.sflag [#allocation5], %s282
        %s284 = sand.u32 %s52, 1
        %s285 = smul.addr %s284, 32
        %s286 = scalar_lea.vmem [#allocation6], %s285
        // Predicated region
        $region43: #{tpu_custom_call.1} parent=23 // pred_check
          %p287 = pneg %p62
        $region44: #{tpu_custom_call.1} parent=23 // pred_check_branch
          %289 = sbr.rel (%p287) target = $region46
        $region45: #{tpu_custom_call.1} parent=23 // pred_region
          %s290 = smul.u32 2, %s18
          %s292 = ssub.s32 512, 512
          %293 = vsyncadd %s283, %s292
          %s294 = smul.addr %s290, 2
          %s295 = smul.addr %s294, 128
          %s296 = scalar_lea.hbm %s1, %s295
          %s297 = sshll.u32 %s286, 4
          %s298 = int_to_ptr.vmem [resolvable:$true] %s297
          %303 = dma.vmem_to_hbm [thread:$0]  %s298, 512, %s296, %s283, 128, 128, 8
        $region46: #{tpu_custom_call.1} parent=23 // pred_fallthru
          _
      $region24: #{tpu_custom_call.1} parent=5 // pred_fallthru
        _
      %p304 = scmp.le.s32.totalorder 2, %s13
      // Predicated region
      $region47: #{tpu_custom_call.1} parent=5 // pred_check
        %p305 = pneg %p304
      $region48: #{tpu_custom_call.1} parent=5 // pred_check_branch
        %307 = sbr.rel (%p305) target = $region50
      $region49: #{tpu_custom_call.1} parent=5 // pred_region
        %s308 = ssub.s32 %s13, 2
        // Predicated region
        $region51: #{tpu_custom_call.1} parent=49 // pred_check
          %p309 = pneg %p68
        $region52: #{tpu_custom_call.1} parent=49 // pred_check_branch
          %311 = sbr.rel (%p309) target = $region54
        $region53: #{tpu_custom_call.1} parent=49 // pred_region
          %s312 = sand.u32 %s53, 1
          %s313 = scalar_lea.sflag [#allocation5], %s312
          %s314 = sand.u32 %s53, 1
          %s315 = smul.addr %s314, 32
          %s316 = scalar_lea.vmem [#allocation6], %s315
          %317 = dma.done %s313, 512
        $region54: #{tpu_custom_call.1} parent=49 // pred_fallthru
          _
      $region50: #{tpu_custom_call.1} parent=5 // pred_fallthru
        _
    $region6: #{tpu_custom_call.1} parent=1 // loop_footer
      %s17 = sadd.s32 1, %s13
    $region7: #{tpu_custom_call.1} parent=1 // loop_footer_branch
      %12 = sbr.rel target = $region3
    $region8: #{tpu_custom_call.1} parent=1 // loop_exit
      _
    %318 = vsyncpa [#allocation4], 1
    %s319 = scalar_lea.sflag [#allocation4], 1
    %320 = vsyncpa %s319, 1
    %321 = vsyncpa [#allocation5], 1
    %s322 = scalar_lea.sflag [#allocation5], 1
    %323 = vsyncpa %s322, 1

</llo_original>
